<compile_context>
chip_gen: v5e
topology: v5e:2x2
jax: 0.10.0
libtpu: 0.0.40
codegen_flags: <defaults>
</compile_context>

<pallas_src>
import functools

import jax
import jax.numpy as jnp
from jax.experimental import pallas as pl
from jax.experimental.pallas import tpu as pltpu


# ----------------------------- Pallas kernel ------------------------------ #
def _rotary_kernel(cos_ref, sin_ref, x_ref, o_ref, *, half, compute_dtype):
    # cos_ref, sin_ref : (tile_r, H)      f32 per-(seq, head) scalars
    # x_ref, o_ref     : (tile_r, H, D)   D = dim, H = dim // 2
    x = x_ref[...]
    # Half-split on the native-dtype data (cheapest data movement), then
    # upcast for the multiply-add (compute_dtype=bf16 is fine on v6e/v7x).
    x1 = x[..., :half].astype(compute_dtype)
    x2 = x[..., half:].astype(compute_dtype)

    # Compact tables: broadcast the per-(seq, head) scalar over the D features
    # in-kernel instead of streaming pre-expanded (S, H*D) tables from HBM.
    cos = cos_ref[...].astype(compute_dtype)[:, :, None]   # (tile_r, H, 1)
    sin = sin_ref[...].astype(compute_dtype)[:, :, None]

    lo = x1 * cos + x2 * sin
    hi = x1 * sin - x2 * cos
    o_ref[...] = jnp.concatenate((lo, hi), axis=-1).astype(o_ref.dtype)


# ------------------------------ Module glue ------------------------------- #
def make_rotary_embedding(dim, max_seq_len, compute_dtype=jnp.float32):
    """Builds compact sin/cos buffers once (as in torch __init__) and returns
    a forward function backed by a Pallas kernel.

    compute_dtype: in-kernel math dtype.  Keep float32 on v5e (no bf16 VALU);
    jnp.bfloat16 is a valid choice on v6e/v7x with bf16 activations (halves
    vreg pressure / VMEM footprint, ~1e-2 rel error).
    """
    inv_freq = 1.0 / (10000.0 ** (jnp.arange(0, dim, 2, dtype=jnp.float32) / dim))
    t = jnp.arange(max_seq_len, dtype=jnp.float32)
    freqs = jnp.einsum("i,j->ij", t, inv_freq)            # (max_seq_len, dim//2)
    sin_tab = jnp.sin(freqs)                               # compact, built ONCE
    cos_tab = jnp.cos(freqs)
    half = dim // 2

    def forward(x, offset=0):
        B, S, H, D = x.shape
        assert D == dim and H == half, (
            "torch broadcasting requires x: (B, S, dim//2, dim)")
        if isinstance(offset, int):
            assert 0 <= offset and offset + S <= max_seq_len

        # dynamic_slice works with both Python-int and traced offsets
        # (no recompile per decode step).
        cos_win = jax.lax.dynamic_slice_in_dim(cos_tab, offset, S, axis=0)  # (S, H)
        sin_win = jax.lax.dynamic_slice_in_dim(sin_tab, offset, S, axis=0)

        # --------- tile sizing (rows = flattened (b, s) pairs) ----------- #
        itemsize = jnp.dtype(x.dtype).itemsize
        sub = {4: 8, 2: 16, 1: 32}.get(itemsize, 8)        # sublane pack of x
        hp = -(-H // sub) * sub                            # padded sublanes (x)
        dp = -(-D // 128) * 128                            # padded lanes (x)
        hl = -(-H // 128) * 128                            # padded lanes (tables)
        # double-buffered input + output block, plus both f32 table blocks
        per_row = 4 * hp * dp * itemsize + 4 * hl * 4
        # ~32 MiB working set: safe on v7x (64 MiB VMEM), conservative for
        # v5e/v6e (128 MiB) -- raise toward 48-64 MiB there if desired.
        budget = 32 * 1024 * 1024
        max_rows = max(1, budget // per_row)

        if S <= max_rows:
            # whole sequence fits in one block -> fold batch elements together
            bb = max(1, min(B, max_rows // S))
            if B >= 2:                                      # keep >=2 grid steps
                bb = min(bb, max(1, B // 2))                # for v7x megacore
            while B % bb:                                   # bb must divide B
                bb -= 1
            tile_r = bb * S
            cos_blk = jnp.tile(cos_win, (bb, 1)) if bb > 1 else cos_win
            sin_blk = jnp.tile(sin_win, (bb, 1)) if bb > 1 else sin_win
        else:
            # tile the sequence; tile must divide S so every block sits inside
            # one batch element and the table index_map stays a simple modulo.
            best_aligned, best_any = 0, 1
            d = 1
            while d * d <= S:
                if S % d == 0:
                    for c in (d, S // d):
                        if c <= max_rows:
                            best_any = max(best_any, c)
                            if c % 8 == 0:
                                best_aligned = max(best_aligned, c)
                d += 1
            tile_r = best_aligned if best_aligned else best_any
            cos_blk, sin_blk = cos_win, sin_win

        x3 = x.reshape(B * S, H, D)                         # free, contiguous
        table_rows = cos_blk.shape[0]
        period = table_rows // tile_r                       # table blocks per seq
        num_r = (B * S) // tile_r

        if period == 1:
            tab_map = lambda r: (0, 0)
        else:
            tab_map = lambda r: (r % period, 0)

        kernel = functools.partial(_rotary_kernel, half=half,
                                   compute_dtype=compute_dtype)
        out3 = pl.pallas_call(
            kernel,
            out_shape=jax.ShapeDtypeStruct((B * S, H, D), x.dtype),
            grid=(num_r,),
            in_specs=[
                pl.BlockSpec((tile_r, H), tab_map),
                pl.BlockSpec((tile_r, H), tab_map),
                pl.BlockSpec((tile_r, H, D), lambda r: (r, 0, 0)),
            ],
            out_specs=pl.BlockSpec((tile_r, H, D), lambda r: (r, 0, 0)),
            compiler_params=pltpu.CompilerParams(
                dimension_semantics=("parallel",),
                vmem_limit_bytes=48 * 1024 * 1024),
            cost_estimate=pl.CostEstimate(
                flops=3 * B * S * H * D,
                bytes_accessed=2 * B * S * H * D * itemsize
                               + 2 * table_rows * H * 4,
                transcendentals=0),
        )(cos_blk, sin_blk, x3)
        return out3.reshape(B, S, H, D)

    return forward, sin_tab, cos_tab


# ------------------------------ Reference --------------------------------- #
def rotary_ref(x, sin_tab, cos_tab, dim, offset=0):
    S = x.shape[1]
    half = dim // 2
    sin = sin_tab[offset:offset + S][:, :, None]            # (S, dim//2, 1)
    cos = cos_tab[offset:offset + S][:, :, None]
    x1, x2 = x[..., :half], x[..., half:]
    return jnp.concatenate([x1 * cos + x2 * sin, x1 * sin - x2 * cos], axis=-1)


# --------------------------------- Main ------------------------------------ #
if __name__ == "__main__":
    dim = 32
    max_seq_len = 64
    B, S, H = 2, 8, dim // 2                                # heads == dim // 2

    key = jax.random.PRNGKey(0)
    x = jax.random.normal(key, (B, S, H, dim), dtype=jnp.float32)

    forward, sin_tab, cos_tab = make_rotary_embedding(dim, max_seq_len)

    out = jax.block_until_ready(forward(x, offset=0))
    ref = rotary_ref(x, sin_tab, cos_tab, dim, offset=0)
    assert out.shape == ref.shape and out.dtype == ref.dtype
    assert jnp.allclose(out, ref, atol=1e-5, rtol=1e-5)

    # Static non-zero offset.
    out2 = jax.block_until_ready(forward(x, offset=3))
    ref2 = rotary_ref(x, sin_tab, cos_tab, dim, offset=3)
    assert jnp.allclose(out2, ref2, atol=1e-5, rtol=1e-5)

    # Traced/dynamic offset (decode-loop style): no recompile, same result.
    out3 = jax.block_until_ready(forward(x, offset=jnp.int32(5)))
    ref3 = rotary_ref(x, sin_tab, cos_tab, dim, offset=5)
    assert jnp.allclose(out3, ref3, atol=1e-5, rtol=1e-5)

    print("KERNEL_OK")
</pallas_src>

<mosaic_0001>
module attributes {stable_mosaic.version = 11 : i64} {
  func.func @_rotary_kernel(%arg0: i32, %arg1: memref<8x16xf32, #tpu.memory_space<vmem>>, %arg2: memref<8x16xf32, #tpu.memory_space<vmem>>, %arg3: memref<8x16x32xf32, #tpu.memory_space<vmem>>, %arg4: memref<8x16x32xf32, #tpu.memory_space<vmem>>) attributes {dimension_semantics = [#tpu.dimension_semantics<parallel>], iteration_bounds = array<i64: 2>, scalar_prefetch = 0 : i64, scratch_operands = 0 : i64, tpu.core_type = #tpu.core_type<tc>, window_params = [{pipeline_mode = #tpu.pipeline_mode<synchronous>, transform_indices = @transform_0, window_bounds = array<i64: 8, 16>}, {pipeline_mode = #tpu.pipeline_mode<synchronous>, transform_indices = @transform_1, window_bounds = array<i64: 8, 16>}, {transform_indices = @transform_2, window_bounds = array<i64: 8, 16, 32>}, {transform_indices = @transform_3, window_bounds = array<i64: 8, 16, 32>}]} {
    %c0 = arith.constant 0 : index
    %c0_0 = arith.constant 0 : index
    %c0_1 = arith.constant 0 : index
    %0 = vector.load %arg3[%c0, %c0_0, %c0_1] : memref<8x16x32xf32, #tpu.memory_space<vmem>>, vector<8x16x32xf32>
    %1 = vector.extract_strided_slice %0 {offsets = [0, 0, 0], sizes = [8, 16, 16], strides = [1, 1, 1]} : vector<8x16x32xf32> to vector<8x16x16xf32>
    %2 = vector.extract_strided_slice %0 {offsets = [0, 0, 16], sizes = [8, 16, 16], strides = [1, 1, 1]} : vector<8x16x32xf32> to vector<8x16x16xf32>
    %c0_2 = arith.constant 0 : index
    %c0_3 = arith.constant 0 : index
    %3 = vector.load %arg1[%c0_2, %c0_3] : memref<8x16xf32, #tpu.memory_space<vmem>>, vector<8x16xf32>
    %4 = vector.shape_cast %3 : vector<8x16xf32> to vector<8x16x1xf32>
    %c0_4 = arith.constant 0 : index
    %c0_5 = arith.constant 0 : index
    %5 = vector.load %arg2[%c0_4, %c0_5] : memref<8x16xf32, #tpu.memory_space<vmem>>, vector<8x16xf32>
    %6 = vector.shape_cast %5 : vector<8x16xf32> to vector<8x16x1xf32>
    %7 = vector.broadcast %4 : vector<8x16x1xf32> to vector<8x16x16xf32>
    %8 = arith.mulf %1, %7 : vector<8x16x16xf32>
    %9 = vector.broadcast %6 : vector<8x16x1xf32> to vector<8x16x16xf32>
    %10 = arith.mulf %2, %9 : vector<8x16x16xf32>
    %11 = arith.addf %8, %10 : vector<8x16x16xf32>
    %12 = vector.broadcast %6 : vector<8x16x1xf32> to vector<8x16x16xf32>
    %13 = arith.mulf %1, %12 : vector<8x16x16xf32>
    %14 = vector.broadcast %4 : vector<8x16x1xf32> to vector<8x16x16xf32>
    %15 = arith.mulf %2, %14 : vector<8x16x16xf32>
    %16 = arith.subf %13, %15 : vector<8x16x16xf32>
    %17 = tpu.concatenate %11, %16 in 2 : vector<8x16x16xf32>, vector<8x16x16xf32> -> vector<8x16x32xf32>
    %c0_6 = arith.constant 0 : index
    %c0_7 = arith.constant 0 : index
    %c0_8 = arith.constant 0 : index
    %18 = vector.load %arg4[%c0_6, %c0_7, %c0_8] : memref<8x16x32xf32, #tpu.memory_space<vmem>>, vector<8x16x32xf32>
    tpu.vector_store %arg4[%c0_6, %c0_7, %c0_8], %17 {strides = array<i32>} : memref<8x16x32xf32, #tpu.memory_space<vmem>>, vector<8x16x32xf32>,
    return
  }
  func.func @transform_0(%arg0: i32) -> (i32, i32) {
    %c0_i32 = arith.constant 0 : i32
    %c0_i32_0 = arith.constant 0 : i32
    %c0_i32_1 = arith.constant 0 : i32
    return %c0_i32, %c0_i32_0 : i32, i32
  }
  func.func @transform_1(%arg0: i32) -> (i32, i32) {
    %c0_i32 = arith.constant 0 : i32
    %c0_i32_0 = arith.constant 0 : i32
    %c0_i32_1 = arith.constant 0 : i32
    return %c0_i32, %c0_i32_0 : i32, i32
  }
  func.func @transform_2(%arg0: i32) -> (i32, i32, i32) {
    %c0_i32 = arith.constant 0 : i32
    %c0_i32_0 = arith.constant 0 : i32
    %c0_i32_1 = arith.constant 0 : i32
    return %arg0, %c0_i32, %c0_i32_0 : i32, i32, i32
  }
  func.func @transform_3(%arg0: i32) -> (i32, i32, i32) {
    %c0_i32 = arith.constant 0 : i32
    %c0_i32_0 = arith.constant 0 : i32
    %c0_i32_1 = arith.constant 0 : i32
    return %arg0, %c0_i32, %c0_i32_0 : i32, i32, i32
  }
}

</mosaic_0001>

<llo_original>
// kernel: tpu_custom_call.1
$region0: #{tpu_custom_call.1}
  #allocation0 [shape = 'u32[]', space=smem, size = 0x4, offset = 0x4, fixed_abs, tag = 'smem constant byte address 0x4 - core index']
  #allocation1 [shape = 'u32[72,128]{1,0:T(1,128)}', space=vmem, size = 0x9000, scoped, tag = 'internal scratch']
  %s0 = inlined_call_operand.hbm [shape: f32[8,16], index: 0, kind: input, shape index: {}]
  %s1 = inlined_call_operand.hbm [shape: f32[8,16], index: 1, kind: input, shape index: {}]
  %s2 = inlined_call_operand.hbm [shape: f32[16,16,32], index: 2, kind: input, shape index: {}]
  %s3 = inlined_call_operand.hbm [shape: f32[16,16,32], index: 3, kind: output, shape index: {}]
  %s4 = sld [smem:[#allocation0]]
  $region57: #{tpu_custom_call.1} parent=0
    _
  %s6 = ssub.s32 1, %s4
  %s7 = scalar_select 0, %s6, %s4
  $region1: #{tpu_custom_call.1} parent=0
    #allocation2 [shape = 'u8[4096]{0}', space=vmem, size = 0x1000, scoped, tag = 'input window, operand 0, single buffered']
    #allocation3 [shape = 's32[2]{0}', space=sflag, size = 0x8, scoped, tag = 'scoped memory for tpu_custom_call.1']
    #allocation4 [shape = 's32[2]{0}', space=sflag, size = 0x8, scoped, tag = 'scoped memory for tpu_custom_call.1']
    #allocation5 [shape = 'u8[4096]{0}', space=vmem, size = 0x1000, scoped, tag = 'input window, operand 1, single buffered']
    #allocation6 [shape = 's32[1]{0}', space=sflag, size = 0x4, scoped, tag = 'scoped memory for tpu_custom_call.1']
    #allocation7 [shape = 'u8[131072]{0}', space=vmem, size = 0x20000, scoped, tag = 'input window, operand 2']
    #allocation8 [shape = 'u8[131072]{0}', space=vmem, size = 0x20000, scoped, tag = 'output window, operand 0']
    %8 = vsyncpa [#allocation3], 0
    %9 = vsyncpa [#allocation6], 0
    %10 = vsyncpa [#allocation4], 0
    %s11 = scalar_lea.sflag [#allocation4], 1
    %12 = vsyncpa %s11, 0
    loop: start=0, step=1, limit=4
    $region2: #{tpu_custom_call.1} parent=1 // loop_pre_header
      _
    $region3: #{tpu_custom_call.1} parent=1 // loop_header
      %s14 = sphi 0, %s18
      %p15 = scmp.ge.s32.totalorder %s14, 4
      %s22 = sphi 0, %s22
      %s24 = sphi 0, %s22
      %s25 = sphi 0, %s24
      %s39 = sphi 0, %s25
      %s43 = sphi 0, %s43
      %s45 = sphi 0, %s43
      %s46 = sphi 0, %s45
      %s60 = sphi 0, %s46
      %s66 = sphi 0, %s68
      %s69 = sphi 0, %s66
      %s70 = sphi 0, %s69
      %s86 = sphi 0, %s70
      %s92 = sphi 0, %s94
      %s95 = sphi 0, %s92
      %s96 = sphi 0, %s95
      %s112 = sphi 0, %s96
    $region4: #{tpu_custom_call.1} parent=1 // loop_header_branch
      %17 = sbr.rel (%p15) target = $region8
    $region5: #{tpu_custom_call.1} parent=1 // loop_body
      %s19 = ssub.s32 %s14, 1
      %s20 = ssub.s32 %s14, 2
      %s21 = sadd.s32 %s14, 1
      %s23 = sadd.s32 %s22, 1
      %p26 = scmp.eq.s32.totalorder %s14, 1
      %p27 = scmp.ne.s32.totalorder %s22, %s24
      %p28 = scmp.eq.s32.totalorder %s14, 0
      %p29 = por %p27, %p28
      %p30 = scmp.ne.s32.totalorder %s22, %s24
      %p31 = scmp.eq.s32.totalorder %s19, 1
      %p32 = por %p30, %p31
      %p33 = scmp.ne.s32.totalorder %s24, %s25
      %p34 = scmp.eq.s32.totalorder %s19, 0
      %p35 = por %p33, %p34
      %p36 = scmp.ne.s32.totalorder %s24, %s25
      %p37 = scmp.eq.s32.totalorder %s20, 1
      %p38 = por %p36, %p37
      %p40 = scmp.ne.s32.totalorder %s25, %s39
      %p41 = scmp.eq.s32.totalorder %s20, 0
      %p42 = por %p40, %p41
      %s44 = sadd.s32 %s43, 1
      %p47 = scmp.eq.s32.totalorder %s14, 1
      %p48 = scmp.ne.s32.totalorder %s43, %s45
      %p49 = scmp.eq.s32.totalorder %s14, 0
      %p50 = por %p48, %p49
      %p51 = scmp.ne.s32.totalorder %s43, %s45
      %p52 = scmp.eq.s32.totalorder %s19, 1
      %p53 = por %p51, %p52
      %p54 = scmp.ne.s32.totalorder %s45, %s46
      %p55 = scmp.eq.s32.totalorder %s19, 0
      %p56 = por %p54, %p55
      %p57 = scmp.ne.s32.totalorder %s45, %s46
      %p58 = scmp.eq.s32.totalorder %s20, 1
      %p59 = por %p57, %p58
      %p61 = scmp.ne.s32.totalorder %s46, %s60
      %p62 = scmp.eq.s32.totalorder %s20, 0
      %p63 = por %p61, %p62
      %s64 = ssub.s32 %s14, %s21
      %p65 = scmp.eq.s32.totalorder %s64, 0
      %s67 = sadd.s32 %s66, 1
      %s68 = scalar_select %p65, %s66, %s67
      %p71 = pneg %p65
      %p72 = scmp.eq.s32.totalorder %s14, 1
      %p73 = por %p71, %p72
      %p74 = scmp.ne.s32.totalorder %s66, %s69
      %p75 = scmp.eq.s32.totalorder %s14, 0
      %p76 = por %p74, %p75
      %p77 = scmp.ne.s32.totalorder %s66, %s69
      %p78 = scmp.eq.s32.totalorder %s19, 1
      %p79 = por %p77, %p78
      %p80 = scmp.ne.s32.totalorder %s69, %s70
      %p81 = scmp.eq.s32.totalorder %s19, 0
      %p82 = por %p80, %p81
      %p83 = scmp.ne.s32.totalorder %s69, %s70
      %p84 = scmp.eq.s32.totalorder %s20, 1
      %p85 = por %p83, %p84
      %p87 = scmp.ne.s32.totalorder %s70, %s86
      %p88 = scmp.eq.s32.totalorder %s20, 0
      %p89 = por %p87, %p88
      %s90 = ssub.s32 %s14, %s21
      %p91 = scmp.eq.s32.totalorder %s90, 0
      %s93 = sadd.s32 %s92, 1
      %s94 = scalar_select %p91, %s92, %s93
      %p97 = pneg %p91
      %p98 = scmp.eq.s32.totalorder %s14, 1
      %p99 = por %p97, %p98
      %p100 = scmp.ne.s32.totalorder %s92, %s95
      %p101 = scmp.eq.s32.totalorder %s14, 0
      %p102 = por %p100, %p101
      %p103 = scmp.ne.s32.totalorder %s92, %s95
      %p104 = scmp.eq.s32.totalorder %s19, 1
      %p105 = por %p103, %p104
      %p106 = scmp.ne.s32.totalorder %s95, %s96
      %p107 = scmp.eq.s32.totalorder %s19, 0
      %p108 = por %p106, %p107
      %p109 = scmp.ne.s32.totalorder %s95, %s96
      %p110 = scmp.eq.s32.totalorder %s20, 1
      %p111 = por %p109, %p110
      %p113 = scmp.ne.s32.totalorder %s96, %s112
      %p114 = scmp.eq.s32.totalorder %s20, 0
      %p115 = por %p113, %p114
      %p116 = scmp.le.s32.totalorder 1, %s14
      %p117 = scmp.lt.s32.totalorder %s14, 3
      %p118 = pnand %p116, %p117
      %p119 = pneg %p118
      // Predicated region
      $region9: #{tpu_custom_call.1} parent=5 // pred_check
        _
      $region10: #{tpu_custom_call.1} parent=5 // pred_check_branch
        %121 = sbr.rel (%p118) target = $region12
      $region11: #{tpu_custom_call.1} parent=5 // pred_region
        %s122 = ssub.s32 %s14, 1
        // Predicated region
        $region13: #{tpu_custom_call.1} parent=11 // pred_check
          %p123 = pneg %p35
        $region14: #{tpu_custom_call.1} parent=11 // pred_check_branch
          %125 = sbr.rel (%p123) target = $region16
        $region15: #{tpu_custom_call.1} parent=11 // pred_region
          %127 = vsyncadd [#allocation3], 0
          %s129 = sshll.u32 %s0, 4
          %s130 = int_to_ptr.hbm [resolvable:$true] %s129
          %s131 = sshll.u32 [#allocation2], 4
          %s132 = int_to_ptr.vmem [resolvable:$true] %s131
          %134 = dma.hbm_to_vmem [thread:$0]  %s130, 128, %s132, [#allocation3]
        $region16: #{tpu_custom_call.1} parent=11 // pred_fallthru
          _
        // Predicated region
        $region17: #{tpu_custom_call.1} parent=11 // pred_check
          %p135 = pneg %p56
        $region18: #{tpu_custom_call.1} parent=11 // pred_check_branch
          %137 = sbr.rel (%p135) target = $region20
        $region19: #{tpu_custom_call.1} parent=11 // pred_region
          %139 = vsyncadd [#allocation6], 0
          %s141 = sshll.u32 %s1, 4
          %s142 = int_to_ptr.hbm [resolvable:$true] %s141
          %s143 = sshll.u32 [#allocation5], 4
          %s144 = int_to_ptr.vmem [resolvable:$true] %s143
          %146 = dma.hbm_to_vmem [thread:$0]  %s142, 128, %s144, [#allocation6]
        $region20: #{tpu_custom_call.1} parent=11 // pred_fallthru
          _
      $region12: #{tpu_custom_call.1} parent=5 // pred_fallthru
        _
      %p147 = scmp.lt.s32.totalorder %s14, 2
      // Predicated region
      $region21: #{tpu_custom_call.1} parent=5 // pred_check
        %p148 = pneg %p147
      $region22: #{tpu_custom_call.1} parent=5 // pred_check_branch
        %150 = sbr.rel (%p148) target = $region24
      $region23: #{tpu_custom_call.1} parent=5 // pred_region
        // Predicated region
        $region25: #{tpu_custom_call.1} parent=23 // pred_check
          %p151 = pneg %p76
        $region26: #{tpu_custom_call.1} parent=23 // pred_check_branch
          %153 = sbr.rel (%p151) target = $region28
        $region27: #{tpu_custom_call.1} parent=23 // pred_region
          %s154 = sand.u32 %s14, 1
          %s155 = scalar_lea.sflag [#allocation3], %s154
          %s156 = sand.u32 %s66, 1
          %s157 = smul.addr %s156, 128
          %s158 = scalar_lea.vmem [#allocation7], %s157
          %s159 = smul.u32 8, %s14
          %161 = vsyncadd %s155, 0
          %s162 = smul.addr %s159, 2
          %s163 = smul.addr %s162, 8
          %s164 = scalar_lea.hbm %s2, %s163
          %s165 = sshll.u32 %s164, 4
          %s166 = int_to_ptr.hbm [resolvable:$true] %s165
          %s167 = sshll.u32 %s158, 4
          %s168 = int_to_ptr.vmem [resolvable:$true] %s167
          %173 = dma.hbm_to_vmem [thread:$0]  %s166, 2048, %s168, %s155, 128, 128, 8
        $region28: #{tpu_custom_call.1} parent=23 // pred_fallthru
          _
      $region24: #{tpu_custom_call.1} parent=5 // pred_fallthru
        _
      %p174 = scmp.le.s32.totalorder 1, %s14
      %p175 = scmp.lt.s32.totalorder %s14, 3
      %p176 = pnand %p174, %p175
      %p177 = pneg %p176
      // Predicated region
      $region29: #{tpu_custom_call.1} parent=5 // pred_check
        _
      $region30: #{tpu_custom_call.1} parent=5 // pred_check_branch
        %179 = sbr.rel (%p176) target = $region32
      $region31: #{tpu_custom_call.1} parent=5 // pred_region
        %s180 = ssub.s32 %s14, 1
        // Predicated region
        $region33: #{tpu_custom_call.1} parent=31 // pred_check
          %p181 = pneg %p35
        $region34: #{tpu_custom_call.1} parent=31 // pred_check_branch
          %183 = sbr.rel (%p181) target = $region36
        $region35: #{tpu_custom_call.1} parent=31 // pred_region
          %185 = dma.done [#allocation3], 128
        $region36: #{tpu_custom_call.1} parent=31 // pred_fallthru
          _
        // Predicated region
        $region37: #{tpu_custom_call.1} parent=31 // pred_check
          %p186 = pneg %p56
        $region38: #{tpu_custom_call.1} parent=31 // pred_check_branch
          %188 = sbr.rel (%p186) target = $region40
        $region39: #{tpu_custom_call.1} parent=31 // pred_region
          %190 = dma.done [#allocation6], 128
        $region40: #{tpu_custom_call.1} parent=31 // pred_fallthru
          _
        %s191 = sand.u32 %s19, 1
        %s192 = scalar_lea.sflag [#allocation3], %s191
        %s193 = sand.u32 %s69, 1
        %s194 = smul.addr %s193, 128
        %s195 = scalar_lea.vmem [#allocation7], %s194
        // Predicated region
        $region41: #{tpu_custom_call.1} parent=31 // pred_check
          %p196 = pneg %p82
        $region42: #{tpu_custom_call.1} parent=31 // pred_check_branch
          %198 = sbr.rel (%p196) target = $region44
        $region43: #{tpu_custom_call.1} parent=31 // pred_region
          %200 = dma.done %s192, 2048
        $region44: #{tpu_custom_call.1} parent=31 // pred_fallthru
          _
        %p201 = pneg %p35
        %p202 = pneg %p32
        %p203 = pneg %p56
        %p204 = pneg %p53
        %s205 = sand.u32 %s19, 1
        %s206 = scalar_lea.sflag [#allocation3], %s205
        %s207 = sand.u32 %s69, 1
        %s208 = smul.addr %s207, 128
        %s209 = scalar_lea.vmem [#allocation7], %s208
        %p210 = pneg %p82
        %p211 = pneg %p79
        %p212 = pneg %p108
        %p213 = pneg %p105
        %s214 = sand.u32 %s95, 1
        %s215 = scalar_lea.sflag [#allocation4], %s214
        %s216 = sand.u32 %s95, 1
        %s217 = smul.addr %s216, 128
        %s218 = scalar_lea.vmem [#allocation8], %s217
        %s219 = smul.u32 8, %s19
        %s220 = smul.u32 8, %s19
        %v221 = vld [vmem:[%s195] sm:$0xff]
        %v222 = vld [vmem:[%s195 + $0x8] sm:$0xff]
        %v223 = vld [vmem:[%s195 + $0x10] sm:$0xff]
        %v224 = vld [vmem:[%s195 + $0x18] sm:$0xff]
        %v225 = vld [vmem:[%s195 + $0x20] sm:$0xff]
        %v226 = vld [vmem:[%s195 + $0x28] sm:$0xff]
        %v227 = vld [vmem:[%s195 + $0x30] sm:$0xff]
        %v228 = vld [vmem:[%s195 + $0x38] sm:$0xff]
        %v229 = vld [vmem:[%s195 + $0x40] sm:$0xff]
        %v230 = vld [vmem:[%s195 + $0x48] sm:$0xff]
        %v231 = vld [vmem:[%s195 + $0x50] sm:$0xff]
        %v232 = vld [vmem:[%s195 + $0x58] sm:$0xff]
        %v233 = vld [vmem:[%s195 + $0x60] sm:$0xff]
        %v234 = vld [vmem:[%s195 + $0x68] sm:$0xff]
        %v235 = vld [vmem:[%s195 + $0x70] sm:$0xff]
        %v236 = vld [vmem:[%s195 + $0x78] sm:$0xff]
        %v237 = vld [vmem:[#allocation2] sm:$0xff]
        %v238 = vperm.slane %v237, 0
        %v239 = vlaneseq
        %v240 = vshrl.u32 %v239, 7
        %242 = vset.pattern.permute.xlu0 %v240
        %243 = vperm.xlu0 %242, %v238
        %v244 = vpop.permute.xlu0 %243
        %v245 = vlaneseq
        %v246 = vshrl.u32 %v245, 7
        %v247 = vadd.s32 %v246, 8
        %248 = vset.pattern.permute.xlu0 %v247
        %249 = vperm.xlu0 %248, %v238
        %v250 = vpop.permute.xlu0 %249
        %v251 = vperm.slane %v237, 1
        %v252 = vlaneseq
        %v253 = vshrl.u32 %v252, 7
        %255 = vset.pattern.permute.xlu0 %v253
        %256 = vperm.xlu0 %255, %v251
        %v257 = vpop.permute.xlu0 %256
        %v258 = vlaneseq
        %v259 = vshrl.u32 %v258, 7
        %v260 = vadd.s32 %v259, 8
        %261 = vset.pattern.permute.xlu0 %v260
        %262 = vperm.xlu0 %261, %v251
        %v263 = vpop.permute.xlu0 %262
        %v264 = vperm.slane %v237, 2
        %v265 = vlaneseq
        %v266 = vshrl.u32 %v265, 7
        %268 = vset.pattern.permute.xlu0 %v266
        %269 = vperm.xlu0 %268, %v264
        %v270 = vpop.permute.xlu0 %269
        %v271 = vlaneseq
        %v272 = vshrl.u32 %v271, 7
        %v273 = vadd.s32 %v272, 8
        %274 = vset.pattern.permute.xlu0 %v273
        %275 = vperm.xlu0 %274, %v264
        %v276 = vpop.permute.xlu0 %275
        %v277 = vperm.slane %v237, 3
        %v278 = vlaneseq
        %v279 = vshrl.u32 %v278, 7
        %281 = vset.pattern.permute.xlu0 %v279
        %282 = vperm.xlu0 %281, %v277
        %v283 = vpop.permute.xlu0 %282
        %v284 = vlaneseq
        %v285 = vshrl.u32 %v284, 7
        %v286 = vadd.s32 %v285, 8
        %287 = vset.pattern.permute.xlu0 %v286
        %288 = vperm.xlu0 %287, %v277
        %v289 = vpop.permute.xlu0 %288
        %v290 = vperm.slane %v237, 4
        %v291 = vlaneseq
        %v292 = vshrl.u32 %v291, 7
        %294 = vset.pattern.permute.xlu0 %v292
        %295 = vperm.xlu0 %294, %v290
        %v296 = vpop.permute.xlu0 %295
        %v297 = vlaneseq
        %v298 = vshrl.u32 %v297, 7
        %v299 = vadd.s32 %v298, 8
        %300 = vset.pattern.permute.xlu0 %v299
        %301 = vperm.xlu0 %300, %v290
        %v302 = vpop.permute.xlu0 %301
        %v303 = vperm.slane %v237, 5
        %v304 = vlaneseq
        %v305 = vshrl.u32 %v304, 7
        %307 = vset.pattern.permute.xlu0 %v305
        %308 = vperm.xlu0 %307, %v303
        %v309 = vpop.permute.xlu0 %308
        %v310 = vlaneseq
        %v311 = vshrl.u32 %v310, 7
        %v312 = vadd.s32 %v311, 8
        %313 = vset.pattern.permute.xlu0 %v312
        %314 = vperm.xlu0 %313, %v303
        %v315 = vpop.permute.xlu0 %314
        %v316 = vperm.slane %v237, 6
        %v317 = vlaneseq
        %v318 = vshrl.u32 %v317, 7
        %320 = vset.pattern.permute.xlu0 %v318
        %321 = vperm.xlu0 %320, %v316
        %v322 = vpop.permute.xlu0 %321
        %v323 = vlaneseq
        %v324 = vshrl.u32 %v323, 7
        %v325 = vadd.s32 %v324, 8
        %326 = vset.pattern.permute.xlu0 %v325
        %327 = vperm.xlu0 %326, %v316
        %v328 = vpop.permute.xlu0 %327
        %v329 = vperm.slane %v237, 7
        %v330 = vlaneseq
        %v331 = vshrl.u32 %v330, 7
        %333 = vset.pattern.permute.xlu0 %v331
        %334 = vperm.xlu0 %333, %v329
        %v335 = vpop.permute.xlu0 %334
        %v336 = vlaneseq
        %v337 = vshrl.u32 %v336, 7
        %v338 = vadd.s32 %v337, 8
        %339 = vset.pattern.permute.xlu0 %v338
        %340 = vperm.xlu0 %339, %v329
        %v341 = vpop.permute.xlu0 %340
        %v342 = vld [vmem:[#allocation5] sm:$0xff]
        %v343 = vperm.slane %v342, 0
        %v344 = vlaneseq
        %v345 = vshrl.u32 %v344, 7
        %347 = vset.pattern.permute.xlu0 %v345
        %348 = vperm.xlu0 %347, %v343
        %v349 = vpop.permute.xlu0 %348
        %v350 = vlaneseq
        %v351 = vshrl.u32 %v350, 7
        %v352 = vadd.s32 %v351, 8
        %353 = vset.pattern.permute.xlu0 %v352
        %354 = vperm.xlu0 %353, %v343
        %v355 = vpop.permute.xlu0 %354
        %v356 = vperm.slane %v342, 1
        %v357 = vlaneseq
        %v358 = vshrl.u32 %v357, 7
        %360 = vset.pattern.permute.xlu0 %v358
        %361 = vperm.xlu0 %360, %v356
        %v362 = vpop.permute.xlu0 %361
        %v363 = vlaneseq
        %v364 = vshrl.u32 %v363, 7
        %v365 = vadd.s32 %v364, 8
        %366 = vset.pattern.permute.xlu0 %v365
        %367 = vperm.xlu0 %366, %v356
        %v368 = vpop.permute.xlu0 %367
        %v369 = vperm.slane %v342, 2
        %v370 = vlaneseq
        %v371 = vshrl.u32 %v370, 7
        %373 = vset.pattern.permute.xlu0 %v371
        %374 = vperm.xlu0 %373, %v369
        %v375 = vpop.permute.xlu0 %374
        %v376 = vlaneseq
        %v377 = vshrl.u32 %v376, 7
        %v378 = vadd.s32 %v377, 8
        %379 = vset.pattern.permute.xlu0 %v378
        %380 = vperm.xlu0 %379, %v369
        %v381 = vpop.permute.xlu0 %380
        %v382 = vperm.slane %v342, 3
        %v383 = vlaneseq
        %v384 = vshrl.u32 %v383, 7
        %386 = vset.pattern.permute.xlu0 %v384
        %387 = vperm.xlu0 %386, %v382
        %v388 = vpop.permute.xlu0 %387
        %v389 = vlaneseq
        %v390 = vshrl.u32 %v389, 7
        %v391 = vadd.s32 %v390, 8
        %392 = vset.pattern.permute.xlu0 %v391
        %393 = vperm.xlu0 %392, %v382
        %v394 = vpop.permute.xlu0 %393
        %v395 = vperm.slane %v342, 4
        %v396 = vlaneseq
        %v397 = vshrl.u32 %v396, 7
        %399 = vset.pattern.permute.xlu0 %v397
        %400 = vperm.xlu0 %399, %v395
        %v401 = vpop.permute.xlu0 %400
        %v402 = vlaneseq
        %v403 = vshrl.u32 %v402, 7
        %v404 = vadd.s32 %v403, 8
        %405 = vset.pattern.permute.xlu0 %v404
        %406 = vperm.xlu0 %405, %v395
        %v407 = vpop.permute.xlu0 %406
        %v408 = vperm.slane %v342, 5
        %v409 = vlaneseq
        %v410 = vshrl.u32 %v409, 7
        %412 = vset.pattern.permute.xlu0 %v410
        %413 = vperm.xlu0 %412, %v408
        %v414 = vpop.permute.xlu0 %413
        %v415 = vlaneseq
        %v416 = vshrl.u32 %v415, 7
        %v417 = vadd.s32 %v416, 8
        %418 = vset.pattern.permute.xlu0 %v417
        %419 = vperm.xlu0 %418, %v408
        %v420 = vpop.permute.xlu0 %419
        %v421 = vperm.slane %v342, 6
        %v422 = vlaneseq
        %v423 = vshrl.u32 %v422, 7
        %425 = vset.pattern.permute.xlu0 %v423
        %426 = vperm.xlu0 %425, %v421
        %v427 = vpop.permute.xlu0 %426
        %v428 = vlaneseq
        %v429 = vshrl.u32 %v428, 7
        %v430 = vadd.s32 %v429, 8
        %431 = vset.pattern.permute.xlu0 %v430
        %432 = vperm.xlu0 %431, %v421
        %v433 = vpop.permute.xlu0 %432
        %v434 = vperm.slane %v342, 7
        %v435 = vlaneseq
        %v436 = vshrl.u32 %v435, 7
        %438 = vset.pattern.permute.xlu0 %v436
        %439 = vperm.xlu0 %438, %v434
        %v440 = vpop.permute.xlu0 %439
        %v441 = vlaneseq
        %v442 = vshrl.u32 %v441, 7
        %v443 = vadd.s32 %v442, 8
        %444 = vset.pattern.permute.xlu0 %v443
        %445 = vperm.xlu0 %444, %v434
        %v446 = vpop.permute.xlu0 %445
        %v447 = vmul.f32 %v221, %v244
        %v448 = vmul.f32 %v222, %v250
        %v449 = vmul.f32 %v223, %v257
        %v450 = vmul.f32 %v224, %v263
        %v451 = vmul.f32 %v225, %v270
        %v452 = vmul.f32 %v226, %v276
        %v453 = vmul.f32 %v227, %v283
        %v454 = vmul.f32 %v228, %v289
        %v455 = vmul.f32 %v229, %v296
        %v456 = vmul.f32 %v230, %v302
        %v457 = vmul.f32 %v231, %v309
        %v458 = vmul.f32 %v232, %v315
        %v459 = vmul.f32 %v233, %v322
        %v460 = vmul.f32 %v234, %v328
        %v461 = vmul.f32 %v235, %v335
        %v462 = vmul.f32 %v236, %v341
        %v463 = vmul.f32 %v221, %v349
        %v464 = vmul.f32 %v222, %v355
        %v465 = vmul.f32 %v223, %v362
        %v466 = vmul.f32 %v224, %v368
        %v467 = vmul.f32 %v225, %v375
        %v468 = vmul.f32 %v226, %v381
        %v469 = vmul.f32 %v227, %v388
        %v470 = vmul.f32 %v228, %v394
        %v471 = vmul.f32 %v229, %v401
        %v472 = vmul.f32 %v230, %v407
        %v473 = vmul.f32 %v231, %v414
        %v474 = vmul.f32 %v232, %v420
        %v475 = vmul.f32 %v233, %v427
        %v476 = vmul.f32 %v234, %v433
        %v477 = vmul.f32 %v235, %v440
        %v478 = vmul.f32 %v236, %v446
        %495 = vrot.lane.b32.xlu0 %v463, 112
        %v496 = vpop.permute.xlu0 %495
        %497 = vrot.lane.b32.xlu0 %v464, 112
        %v498 = vpop.permute.xlu0 %497
        %499 = vrot.lane.b32.xlu0 %v465, 112
        %v500 = vpop.permute.xlu0 %499
        %501 = vrot.lane.b32.xlu0 %v466, 112
        %v502 = vpop.permute.xlu0 %501
        %503 = vrot.lane.b32.xlu0 %v467, 112
        %v504 = vpop.permute.xlu0 %503
        %505 = vrot.lane.b32.xlu0 %v468, 112
        %v506 = vpop.permute.xlu0 %505
        %507 = vrot.lane.b32.xlu0 %v469, 112
        %v508 = vpop.permute.xlu0 %507
        %509 = vrot.lane.b32.xlu0 %v470, 112
        %v510 = vpop.permute.xlu0 %509
        %511 = vrot.lane.b32.xlu0 %v471, 112
        %v512 = vpop.permute.xlu0 %511
        %513 = vrot.lane.b32.xlu0 %v472, 112
        %v514 = vpop.permute.xlu0 %513
        %515 = vrot.lane.b32.xlu0 %v473, 112
        %v516 = vpop.permute.xlu0 %515
        %517 = vrot.lane.b32.xlu0 %v474, 112
        %v518 = vpop.permute.xlu0 %517
        %519 = vrot.lane.b32.xlu0 %v475, 112
        %v520 = vpop.permute.xlu0 %519
        %521 = vrot.lane.b32.xlu0 %v476, 112
        %v522 = vpop.permute.xlu0 %521
        %523 = vrot.lane.b32.xlu0 %v477, 112
        %v524 = vpop.permute.xlu0 %523
        %525 = vrot.lane.b32.xlu0 %v478, 112
        %v526 = vpop.permute.xlu0 %525
        %v543 = vadd.f32 %v447, %v496
        %v544 = vadd.f32 %v448, %v498
        %v545 = vadd.f32 %v449, %v500
        %v546 = vadd.f32 %v450, %v502
        %v547 = vadd.f32 %v451, %v504
        %v548 = vadd.f32 %v452, %v506
        %v549 = vadd.f32 %v453, %v508
        %v550 = vadd.f32 %v454, %v510
        %v551 = vadd.f32 %v455, %v512
        %v552 = vadd.f32 %v456, %v514
        %v553 = vadd.f32 %v457, %v516
        %v554 = vadd.f32 %v458, %v518
        %v555 = vadd.f32 %v459, %v520
        %v556 = vadd.f32 %v460, %v522
        %v557 = vadd.f32 %v461, %v524
        %v558 = vadd.f32 %v462, %v526
        %575 = vrot.lane.b32.xlu0 %v447, 112
        %v576 = vpop.permute.xlu0 %575
        %577 = vrot.lane.b32.xlu0 %v448, 112
        %v578 = vpop.permute.xlu0 %577
        %579 = vrot.lane.b32.xlu0 %v449, 112
        %v580 = vpop.permute.xlu0 %579
        %581 = vrot.lane.b32.xlu0 %v450, 112
        %v582 = vpop.permute.xlu0 %581
        %583 = vrot.lane.b32.xlu0 %v451, 112
        %v584 = vpop.permute.xlu0 %583
        %585 = vrot.lane.b32.xlu0 %v452, 112
        %v586 = vpop.permute.xlu0 %585
        %587 = vrot.lane.b32.xlu0 %v453, 112
        %v588 = vpop.permute.xlu0 %587
        %589 = vrot.lane.b32.xlu0 %v454, 112
        %v590 = vpop.permute.xlu0 %589
        %591 = vrot.lane.b32.xlu0 %v455, 112
        %v592 = vpop.permute.xlu0 %591
        %593 = vrot.lane.b32.xlu0 %v456, 112
        %v594 = vpop.permute.xlu0 %593
        %595 = vrot.lane.b32.xlu0 %v457, 112
        %v596 = vpop.permute.xlu0 %595
        %597 = vrot.lane.b32.xlu0 %v458, 112
        %v598 = vpop.permute.xlu0 %597
        %599 = vrot.lane.b32.xlu0 %v459, 112
        %v600 = vpop.permute.xlu0 %599
        %601 = vrot.lane.b32.xlu0 %v460, 112
        %v602 = vpop.permute.xlu0 %601
        %603 = vrot.lane.b32.xlu0 %v461, 112
        %v604 = vpop.permute.xlu0 %603
        %605 = vrot.lane.b32.xlu0 %v462, 112
        %v606 = vpop.permute.xlu0 %605
        %v623 = vsub.f32 %v463, %v576
        %v624 = vsub.f32 %v464, %v578
        %v625 = vsub.f32 %v465, %v580
        %v626 = vsub.f32 %v466, %v582
        %v627 = vsub.f32 %v467, %v584
        %v628 = vsub.f32 %v468, %v586
        %v629 = vsub.f32 %v469, %v588
        %v630 = vsub.f32 %v470, %v590
        %v631 = vsub.f32 %v471, %v592
        %v632 = vsub.f32 %v472, %v594
        %v633 = vsub.f32 %v473, %v596
        %v634 = vsub.f32 %v474, %v598
        %v635 = vsub.f32 %v475, %v600
        %v636 = vsub.f32 %v476, %v602
        %v637 = vsub.f32 %v477, %v604
        %v638 = vsub.f32 %v478, %v606
        %655 = vrot.lane.b32.xlu0 %v623, 16
        %v656 = vpop.permute.xlu0 %655
        %657 = vrot.lane.b32.xlu0 %v624, 16
        %v658 = vpop.permute.xlu0 %657
        %659 = vrot.lane.b32.xlu0 %v625, 16
        %v660 = vpop.permute.xlu0 %659
        %661 = vrot.lane.b32.xlu0 %v626, 16
        %v662 = vpop.permute.xlu0 %661
        %663 = vrot.lane.b32.xlu0 %v627, 16
        %v664 = vpop.permute.xlu0 %663
        %665 = vrot.lane.b32.xlu0 %v628, 16
        %v666 = vpop.permute.xlu0 %665
        %667 = vrot.lane.b32.xlu0 %v629, 16
        %v668 = vpop.permute.xlu0 %667
        %669 = vrot.lane.b32.xlu0 %v630, 16
        %v670 = vpop.permute.xlu0 %669
        %671 = vrot.lane.b32.xlu0 %v631, 16
        %v672 = vpop.permute.xlu0 %671
        %673 = vrot.lane.b32.xlu0 %v632, 16
        %v674 = vpop.permute.xlu0 %673
        %675 = vrot.lane.b32.xlu0 %v633, 16
        %v676 = vpop.permute.xlu0 %675
        %677 = vrot.lane.b32.xlu0 %v634, 16
        %v678 = vpop.permute.xlu0 %677
        %679 = vrot.lane.b32.xlu0 %v635, 16
        %v680 = vpop.permute.xlu0 %679
        %681 = vrot.lane.b32.xlu0 %v636, 16
        %v682 = vpop.permute.xlu0 %681
        %683 = vrot.lane.b32.xlu0 %v637, 16
        %v684 = vpop.permute.xlu0 %683
        %685 = vrot.lane.b32.xlu0 %v638, 16
        %v686 = vpop.permute.xlu0 %685
        %vm703 = vcmask 130048
        %v704 = vsel %vm703, %v543, %v656
        %v705 = vsel %vm703, %v544, %v658
        %v706 = vsel %vm703, %v545, %v660
        %v707 = vsel %vm703, %v546, %v662
        %v708 = vsel %vm703, %v547, %v664
        %v709 = vsel %vm703, %v548, %v666
        %v710 = vsel %vm703, %v549, %v668
        %v711 = vsel %vm703, %v550, %v670
        %v712 = vsel %vm703, %v551, %v672
        %v713 = vsel %vm703, %v552, %v674
        %v714 = vsel %vm703, %v553, %v676
        %v715 = vsel %vm703, %v554, %v678
        %v716 = vsel %vm703, %v555, %v680
        %v717 = vsel %vm703, %v556, %v682
        %v718 = vsel %vm703, %v557, %v684
        %v719 = vsel %vm703, %v558, %v686
        %vm720 = vcmask 261120
        %721 = vst.msk [vmem:[%s218] sm:$0xff] %vm720, %v704
        %722 = vst.msk [vmem:[%s218 + $0x8] sm:$0xff] %vm720, %v705
        %723 = vst.msk [vmem:[%s218 + $0x10] sm:$0xff] %vm720, %v706
        %724 = vst.msk [vmem:[%s218 + $0x18] sm:$0xff] %vm720, %v707
        %725 = vst.msk [vmem:[%s218 + $0x20] sm:$0xff] %vm720, %v708
        %726 = vst.msk [vmem:[%s218 + $0x28] sm:$0xff] %vm720, %v709
        %727 = vst.msk [vmem:[%s218 + $0x30] sm:$0xff] %vm720, %v710
        %728 = vst.msk [vmem:[%s218 + $0x38] sm:$0xff] %vm720, %v711
        %729 = vst.msk [vmem:[%s218 + $0x40] sm:$0xff] %vm720, %v712
        %730 = vst.msk [vmem:[%s218 + $0x48] sm:$0xff] %vm720, %v713
        %731 = vst.msk [vmem:[%s218 + $0x50] sm:$0xff] %vm720, %v714
        %732 = vst.msk [vmem:[%s218 + $0x58] sm:$0xff] %vm720, %v715
        %733 = vst.msk [vmem:[%s218 + $0x60] sm:$0xff] %vm720, %v716
        %734 = vst.msk [vmem:[%s218 + $0x68] sm:$0xff] %vm720, %v717
        %735 = vst.msk [vmem:[%s218 + $0x70] sm:$0xff] %vm720, %v718
        %736 = vst.msk [vmem:[%s218 + $0x78] sm:$0xff] %vm720, %v719
        %s737 = sand.u32 %s95, 1
        %s738 = scalar_lea.sflag [#allocation4], %s737
        %s739 = sand.u32 %s95, 1
        %s740 = smul.addr %s739, 128
        %s741 = scalar_lea.vmem [#allocation8], %s740
        // Predicated region
        $region45: #{tpu_custom_call.1} parent=31 // pred_check
          %p742 = pneg %p105
        $region46: #{tpu_custom_call.1} parent=31 // pred_check_branch
          %744 = sbr.rel (%p742) target = $region48
        $region47: #{tpu_custom_call.1} parent=31 // pred_region
          %s745 = smul.u32 8, %s19
          %747 = vsyncadd %s738, 0
          %s748 = smul.addr %s745, 2
          %s749 = smul.addr %s748, 8
          %s750 = scalar_lea.hbm %s3, %s749
          %s751 = sshll.u32 %s741, 4
          %s752 = int_to_ptr.vmem [resolvable:$true] %s751
          %s753 = sshll.u32 %s750, 4
          %s754 = int_to_ptr.hbm [resolvable:$true] %s753
          %759 = dma.vmem_to_hbm [thread:$0]  %s752, 2048, %s754, %s738, 128, 128, 8
        $region48: #{tpu_custom_call.1} parent=31 // pred_fallthru
          _
      $region32: #{tpu_custom_call.1} parent=5 // pred_fallthru
        _
      %p760 = scmp.le.s32.totalorder 2, %s14
      // Predicated region
      $region49: #{tpu_custom_call.1} parent=5 // pred_check
        %p761 = pneg %p760
      $region50: #{tpu_custom_call.1} parent=5 // pred_check_branch
        %763 = sbr.rel (%p761) target = $region52
      $region51: #{tpu_custom_call.1} parent=5 // pred_region
        %s764 = ssub.s32 %s14, 2
        // Predicated region
        $region53: #{tpu_custom_call.1} parent=51 // pred_check
          %p765 = pneg %p111
        $region54: #{tpu_custom_call.1} parent=51 // pred_check_branch
          %767 = sbr.rel (%p765) target = $region56
        $region55: #{tpu_custom_call.1} parent=51 // pred_region
          %s768 = sand.u32 %s96, 1
          %s769 = scalar_lea.sflag [#allocation4], %s768
          %s770 = sand.u32 %s96, 1
          %s771 = smul.addr %s770, 128
          %s772 = scalar_lea.vmem [#allocation8], %s771
          %774 = dma.done %s769, 2048
        $region56: #{tpu_custom_call.1} parent=51 // pred_fallthru
          _
      $region52: #{tpu_custom_call.1} parent=5 // pred_fallthru
        _
    $region6: #{tpu_custom_call.1} parent=1 // loop_footer
      %s18 = sadd.s32 1, %s14
    $region7: #{tpu_custom_call.1} parent=1 // loop_footer_branch
      %13 = sbr.rel target = $region3
    $region8: #{tpu_custom_call.1} parent=1 // loop_exit
      _
    %775 = vsyncpa [#allocation3], 1
    %s776 = scalar_lea.sflag [#allocation3], 1
    %777 = vsyncpa %s776, 1
    %778 = vsyncpa [#allocation6], 1
    %779 = vsyncpa [#allocation4], 1
    %s780 = scalar_lea.sflag [#allocation4], 1
    %781 = vsyncpa %s780, 1

</llo_original>
